<compile_context>
chip_gen: v6e
topology: v6e:2x2x1
jax: 0.10.0
libtpu: 0.0.40
codegen_flags: <defaults>
</compile_context>

<pallas_src>
import jax
import jax.numpy as jnp
from jax.experimental import pallas as pl
from jax.experimental.pallas import tpu as pltpu


def _pool_kernel(x_ref, o_ref):
    # x_ref block: (TB, TH, Wl).  Partial max over this H-chunk -> (TB, Wl),
    # accumulated into the resident output block across the "arbitrary" H axis.
    part = jnp.max(x_ref[...], axis=1)
    h = pl.program_id(1)

    @pl.when(h == 0)
    def _():
        o_ref[...] = part

    @pl.when(h > 0)
    def _():
        o_ref[...] = jnp.maximum(o_ref[...], part)


def _choose_lane_pack(H, W):
    """Pick k | H so the packed lane dim k*W is lane-dense (>=128) if possible."""
    if W >= 128:
        return 1
    divisors = [d for d in range(1, H + 1) if H % d == 0]
    # Prefer the smallest divisor whose packed lane dim is a multiple of 128
    # while leaving >= 2 H-chunks for the in-kernel reduction.
    for d in divisors:
        if (d * W) % 128 == 0 and H // d >= 2:
            return d
    # Else the smallest divisor reaching >= 128 lanes.
    for d in divisors:
        if d * W >= 128 and H // d >= 2:
            return d
    # Else the largest divisor that still leaves >= 2 H-chunks to reduce.
    for d in reversed(divisors):
        if H // d >= 2:
            return d
    return 1


def _choose_h_tile(Hr, Wl, itemsize, budget_bytes):
    """Chunk of the (packed) H axis.  Must divide Hr exactly (a partial block on
    the reduction axis would max garbage padding into valid rows) and, if it is
    a partial chunk, be a multiple of 8 (sublane block rule)."""
    if Hr * Wl * itemsize <= budget_bytes:
        return Hr
    for d in range(Hr - 1, 0, -1):
        if Hr % d == 0 and d % 8 == 0 and d * Wl * itemsize <= budget_bytes:
            return d
    return Hr


def global_max_pool1d(x, *, target_block_bytes=4 * 1024 * 1024):
    """x: (N, C, H, W) -> squeeze(max over H), matching the PyTorch module."""
    N, C, H, W = x.shape
    B = N * C
    itemsize = jnp.dtype(x.dtype).itemsize

    # Lane packing: fold k rows of H into the lane axis (free reshape).
    k = _choose_lane_pack(H, W)
    Hr = H // k
    Wl = k * W
    xr = x.reshape(B, Hr, Wl)

    # Reduction-axis chunk (half the budget per single batch row's chunk).
    TH = _choose_h_tile(Hr, Wl, itemsize, target_block_bytes // 2)
    num_h = Hr // TH

    # Batch tile: fill ~4 MiB input blocks (double-buffered ~8 MiB, safe within
    # the scoped-VMEM limit on v5e/v6e/v7x).  Multiple of 8 unless TB == B so
    # the output block's sublane dim satisfies the (8, 128) rule.
    row_bytes = TH * Wl * itemsize
    TB = max(1, target_block_bytes // row_bytes)
    if TB >= B:
        TB = B
    else:
        TB = max(8, (TB // 8) * 8)
    num_b = pl.cdiv(B, TB)

    out_kw = pl.pallas_call(
        _pool_kernel,
        out_shape=jax.ShapeDtypeStruct((B, Wl), x.dtype),
        grid_spec=pltpu.PrefetchScalarGridSpec(
            num_scalar_prefetch=0,
            grid=(num_b, num_h),
            in_specs=[pl.BlockSpec((TB, TH, Wl), lambda b, h: (b, h, 0))],
            out_specs=pl.BlockSpec((TB, Wl), lambda b, h: (b, 0)),
        ),
        compiler_params=pltpu.CompilerParams(
            dimension_semantics=("parallel", "arbitrary"),
            vmem_limit_bytes=32 * 1024 * 1024,
        ),
        cost_estimate=pl.CostEstimate(
            flops=B * H * W,
            transcendentals=0,
            bytes_accessed=(B * H * W + B * W) * itemsize,
        ),
    )(xr)

    # Residual max over the k lane-packed groups (output-sized, negligible traffic).
    out = out_kw if k == 1 else jnp.max(out_kw.reshape(B, k, W), axis=1)

    out = out.reshape(N, C, 1, W)
    # torch.squeeze removes all size-1 dims (the pooled H dim, plus any
    # incidental size-1 batch/channel dims) — intentional match to the module.
    return jnp.squeeze(out)


if __name__ == "__main__":
    key = jax.random.PRNGKey(0)
    N, C, H, W = 2, 4, 16, 16
    x = jax.random.normal(key, (N, C, H, W), dtype=jnp.float32)

    out = global_max_pool1d(x)
    out = jax.block_until_ready(out)

    # Reference check in plain JAX (max over H, then squeeze).
    ref = jnp.squeeze(jnp.max(x, axis=-2, keepdims=True))
    assert out.shape == ref.shape, (out.shape, ref.shape)
    assert jnp.allclose(out, ref), "mismatch vs reference"

    print("KERNEL_OK")
</pallas_src>

<mosaic_0001>
module attributes {stable_mosaic.version = 11 : i64} {
  func.func @_pool_kernel(%arg0: i32, %arg1: i32, %arg2: memref<8x2x128xf32, #tpu.memory_space<vmem>>, %arg3: memref<8x128xf32, #tpu.memory_space<vmem>>) attributes {dimension_semantics = [#tpu.dimension_semantics<parallel>, #tpu.dimension_semantics<arbitrary>], iteration_bounds = array<i64: 1, 1>, scalar_prefetch = 0 : i64, scratch_operands = 0 : i64, tpu.core_type = #tpu.core_type<tc>, window_params = [{transform_indices = @transform_0, window_bounds = array<i64: 8, 2, 128>}, {transform_indices = @transform_1, window_bounds = array<i64: 8, 128>}]} {
    %c0 = arith.constant 0 : index
    %c0_0 = arith.constant 0 : index
    %c0_1 = arith.constant 0 : index
    %0 = vector.load %arg2[%c0, %c0_0, %c0_1] : memref<8x2x128xf32, #tpu.memory_space<vmem>>, vector<8x2x128xf32>
    %cst = arith.constant dense<0xFF800000> : vector<8x128xf32>
    %1 = vector.multi_reduction <maximumf>, %0, %cst [1] : vector<8x2x128xf32> to vector<8x128xf32>
    %c0_i32 = arith.constant 0 : i32
    %2 = arith.cmpi eq, %arg1, %c0_i32 : i32
    %3 = arith.extui %2 : i1 to i32
    %c0_i32_2 = arith.constant 0 : i32
    %4 = arith.cmpi ne, %3, %c0_i32_2 : i32
    scf.if %4 {
      %c0_5 = arith.constant 0 : index
      %c0_6 = arith.constant 0 : index
      %8 = vector.load %arg3[%c0_5, %c0_6] : memref<8x128xf32, #tpu.memory_space<vmem>>, vector<8x128xf32>
      tpu.vector_store %arg3[%c0_5, %c0_6], %1 {strides = array<i32>} : memref<8x128xf32, #tpu.memory_space<vmem>>, vector<8x128xf32>,
    } else {
    }
    %c0_i32_3 = arith.constant 0 : i32
    %5 = arith.cmpi sgt, %arg1, %c0_i32_3 : i32
    %6 = arith.extui %5 : i1 to i32
    %c0_i32_4 = arith.constant 0 : i32
    %7 = arith.cmpi ne, %6, %c0_i32_4 : i32
    scf.if %7 {
      %c0_5 = arith.constant 0 : index
      %c0_6 = arith.constant 0 : index
      %8 = vector.load %arg3[%c0_5, %c0_6] : memref<8x128xf32, #tpu.memory_space<vmem>>, vector<8x128xf32>
      %9 = arith.maximumf %8, %1 : vector<8x128xf32>
      %c0_7 = arith.constant 0 : index
      %c0_8 = arith.constant 0 : index
      %10 = vector.load %arg3[%c0_7, %c0_8] : memref<8x128xf32, #tpu.memory_space<vmem>>, vector<8x128xf32>
      tpu.vector_store %arg3[%c0_7, %c0_8], %9 {strides = array<i32>} : memref<8x128xf32, #tpu.memory_space<vmem>>, vector<8x128xf32>,
    } else {
    }
    return
  }
  func.func @transform_0(%arg0: i32, %arg1: i32) -> (i32, i32, i32) {
    %c0_i32 = arith.constant 0 : i32
    %c0_i32_0 = arith.constant 0 : i32
    return %arg0, %arg1, %c0_i32 : i32, i32, i32
  }
  func.func @transform_1(%arg0: i32, %arg1: i32) -> (i32, i32) {
    %c0_i32 = arith.constant 0 : i32
    %c0_i32_0 = arith.constant 0 : i32
    return %arg0, %c0_i32 : i32, i32
  }
}

</mosaic_0001>

<llo_original>
// kernel: tpu_custom_call.1
$region0: #{tpu_custom_call.1}
  #allocation0 [shape = 'u32[]', space=smem, size = 0x4, offset = 0x4, fixed_abs, tag = 'smem constant byte address 0x4 - core index']
  #allocation1 [shape = 'u32[144,128]{1,0:T(1,128)}', space=vmem, size = 0x12000, scoped, tag = 'internal scratch']
  %s0 = inlined_call_operand.hbm [shape: f32[8,2,128], index: 0, kind: input, shape index: {}]
  %s1 = inlined_call_operand.hbm [shape: f32[8,128], index: 1, kind: output, shape index: {}]
  %s2 = sld [smem:[#allocation0]]
  $region26: #{tpu_custom_call.1} parent=0
    _
  %s4 = ssub.s32 1, %s2
  %s5 = scalar_select 0, %s4, %s2
  $region1: #{tpu_custom_call.1} parent=0
    #allocation2 [shape = 'u8[8192]{0}', space=vmem, size = 0x2000, scoped, tag = 'input window, operand 0, single buffered']
    #allocation3 [shape = 's32[1]{0}', space=sflag, size = 0x4, scoped, tag = 'scoped memory for tpu_custom_call.1']
    #allocation4 [shape = 's32[1]{0}', space=sflag, size = 0x4, scoped, tag = 'scoped memory for tpu_custom_call.1']
    #allocation5 [shape = 'u8[4096]{0}', space=vmem, size = 0x1000, scoped, tag = 'output window, operand 0, single buffered']
    %6 = vsyncpa [#allocation3], 0
    %7 = vsyncpa [#allocation4], 0
    // Predicated region
    $region2: #{tpu_custom_call.1} parent=1 // pred_check
      _
    $region3: #{tpu_custom_call.1} parent=1 // pred_check_branch
      %9 = sbr.rel (0) target = $region5
    $region4: #{tpu_custom_call.1} parent=1 // pred_region
      %s11 = ssub.s32 256, 256
      %12 = vsyncadd [#allocation3], %s11
      %s13 = sshll.u32 [#allocation2], 4
      %s14 = int_to_ptr.vmem [resolvable:$true] %s13
      %19 = dma.hbm_to_vmem [thread:$0]  %s0, 256, %s14, [#allocation3], 32, 32, 2
    $region5: #{tpu_custom_call.1} parent=1 // pred_fallthru
      _
    // Predicated region
    $region6: #{tpu_custom_call.1} parent=1 // pred_check
      _
    $region7: #{tpu_custom_call.1} parent=1 // pred_check_branch
      %21 = sbr.rel (0) target = $region9
    $region8: #{tpu_custom_call.1} parent=1 // pred_region
      %22 = dma.done [#allocation3], 256
    $region9: #{tpu_custom_call.1} parent=1 // pred_fallthru
      _
    %v23 = vld [vmem:[#allocation2] sm:$0x3]
    %v24 = vld [vmem:[#allocation2 + $0x2] sm:$0x3]
    %v25 = vld [vmem:[#allocation2 + $0x4] sm:$0x3]
    %v26 = vld [vmem:[#allocation2 + $0x6] sm:$0x3]
    %v27 = vld [vmem:[#allocation2 + $0x8] sm:$0x3]
    %v28 = vld [vmem:[#allocation2 + $0xa] sm:$0x3]
    %v29 = vld [vmem:[#allocation2 + $0xc] sm:$0x3]
    %v30 = vld [vmem:[#allocation2 + $0xe] sm:$0x3]
    %vm31 = vcmask 1041408
    %v32 = vsel %vm31, %v23, -inf
    %v33 = vrot.slane %v32, 4
    %v34 = vmax.f32 %v32, %v33
    %v35 = vrot.slane %v34, 2
    %v36 = vmax.f32 %v34, %v35
    %v37 = vrot.slane %v36, 1
    %v38 = vmax.f32 %v36, %v37
    %v39 = vsel %vm31, %v24, -inf
    %v40 = vrot.slane %v39, 4
    %v41 = vmax.f32 %v39, %v40
    %v42 = vrot.slane %v41, 2
    %v43 = vmax.f32 %v41, %v42
    %v44 = vrot.slane %v43, 1
    %v45 = vmax.f32 %v43, %v44
    %v46 = vsel %vm31, %v25, -inf
    %v47 = vrot.slane %v46, 4
    %v48 = vmax.f32 %v46, %v47
    %v49 = vrot.slane %v48, 2
    %v50 = vmax.f32 %v48, %v49
    %v51 = vrot.slane %v50, 1
    %v52 = vmax.f32 %v50, %v51
    %v53 = vsel %vm31, %v26, -inf
    %v54 = vrot.slane %v53, 4
    %v55 = vmax.f32 %v53, %v54
    %v56 = vrot.slane %v55, 2
    %v57 = vmax.f32 %v55, %v56
    %v58 = vrot.slane %v57, 1
    %v59 = vmax.f32 %v57, %v58
    %v60 = vsel %vm31, %v27, -inf
    %v61 = vrot.slane %v60, 4
    %v62 = vmax.f32 %v60, %v61
    %v63 = vrot.slane %v62, 2
    %v64 = vmax.f32 %v62, %v63
    %v65 = vrot.slane %v64, 1
    %v66 = vmax.f32 %v64, %v65
    %v67 = vsel %vm31, %v28, -inf
    %v68 = vrot.slane %v67, 4
    %v69 = vmax.f32 %v67, %v68
    %v70 = vrot.slane %v69, 2
    %v71 = vmax.f32 %v69, %v70
    %v72 = vrot.slane %v71, 1
    %v73 = vmax.f32 %v71, %v72
    %v74 = vsel %vm31, %v29, -inf
    %v75 = vrot.slane %v74, 4
    %v76 = vmax.f32 %v74, %v75
    %v77 = vrot.slane %v76, 2
    %v78 = vmax.f32 %v76, %v77
    %v79 = vrot.slane %v78, 1
    %v80 = vmax.f32 %v78, %v79
    %v81 = vsel %vm31, %v30, -inf
    %v82 = vrot.slane %v81, 4
    %v83 = vmax.f32 %v81, %v82
    %v84 = vrot.slane %v83, 2
    %v85 = vmax.f32 %v83, %v84
    %v86 = vrot.slane %v85, 1
    %v87 = vmax.f32 %v85, %v86
    %p88 = scmp.eq.s32.totalorder 0, 0
    // Predicated region
    $region10: #{tpu_custom_call.1} parent=1 // pred_check
      %p89 = pneg %p88
    $region11: #{tpu_custom_call.1} parent=1 // pred_check_branch
      %91 = sbr.rel (%p89) target = $region13
    $region12: #{tpu_custom_call.1} parent=1 // pred_region
      %vm100 = vcmask 1041409
      %v101 = vsel %vm100, %v45, %v38
      %vm102 = vcmask 1042434
      %v103 = vsel %vm102, %v52, %v101
      %vm104 = vcmask 1043459
      %v105 = vsel %vm104, %v59, %v103
      %vm106 = vcmask 1044484
      %v107 = vsel %vm106, %v66, %v105
      %vm108 = vcmask 1045509
      %v109 = vsel %vm108, %v73, %v107
      %vm110 = vcmask 1046534
      %v111 = vsel %vm110, %v80, %v109
      %vm112 = vcmask 1047559
      %v113 = vsel %vm112, %v87, %v111
      %115 = vst [vmem:[#allocation5] sm:$0xff] %v113
    $region13: #{tpu_custom_call.1} parent=1 // pred_fallthru
      _
    %p116 = scmp.gt.s32.totalorder 0, 0
    // Predicated region
    $region14: #{tpu_custom_call.1} parent=1 // pred_check
      %p117 = pneg %p116
    $region15: #{tpu_custom_call.1} parent=1 // pred_check_branch
      %119 = sbr.rel (%p117) target = $region17
    $region16: #{tpu_custom_call.1} parent=1 // pred_region
      %v120 = vld [vmem:[#allocation5] sm:$0xff]
      %vm129 = vcmask 1041409
      %v130 = vsel %vm129, %v45, %v38
      %vm131 = vcmask 1042434
      %v132 = vsel %vm131, %v52, %v130
      %vm133 = vcmask 1043459
      %v134 = vsel %vm133, %v59, %v132
      %vm135 = vcmask 1044484
      %v136 = vsel %vm135, %v66, %v134
      %vm137 = vcmask 1045509
      %v138 = vsel %vm137, %v73, %v136
      %vm139 = vcmask 1046534
      %v140 = vsel %vm139, %v80, %v138
      %vm141 = vcmask 1047559
      %v142 = vsel %vm141, %v87, %v140
      %v144 = vmax.f32 %v120, %v142
      %145 = vst [vmem:[#allocation5] sm:$0xff] %v144
    $region17: #{tpu_custom_call.1} parent=1 // pred_fallthru
      _
    // Predicated region
    $region18: #{tpu_custom_call.1} parent=1 // pred_check
      _
    $region19: #{tpu_custom_call.1} parent=1 // pred_check_branch
      %147 = sbr.rel (0) target = $region21
    $region20: #{tpu_custom_call.1} parent=1 // pred_region
      %s149 = ssub.s32 128, 128
      %150 = vsyncadd [#allocation4], %s149
      %s152 = sshll.u32 [#allocation5], 4
      %s153 = int_to_ptr.vmem [resolvable:$true] %s152
      %155 = dma.vmem_to_hbm [thread:$0]  %s153, 128, %s1, [#allocation4]
    $region21: #{tpu_custom_call.1} parent=1 // pred_fallthru
      _
    // Predicated region
    $region22: #{tpu_custom_call.1} parent=1 // pred_check
      _
    $region23: #{tpu_custom_call.1} parent=1 // pred_check_branch
      %157 = sbr.rel (0) target = $region25
    $region24: #{tpu_custom_call.1} parent=1 // pred_region
      %158 = dma.done [#allocation4], 128
    $region25: #{tpu_custom_call.1} parent=1 // pred_fallthru
      _
    %159 = vsyncpa [#allocation3], 1
    %160 = vsyncpa [#allocation4], 1

</llo_original>
